<compile_context>
chip_gen: v5e
topology: v5e:2x2
jax: 0.10.0
libtpu: 0.0.40
codegen_flags: <defaults>
</compile_context>

<pallas_src>
import jax
import jax.numpy as jnp
from jax.experimental import pallas as pl
from jax.experimental.pallas import tpu as pltpu


def _textrnn_kernel(tok_ref, emb_ref, wih_ref, whh_ref, bias_ref, o_ref):
    """Fused embedding + vanilla-RNN + softmax for one batch element.

    tok_ref : SMEM (B, L) int32  -- scalar-prefetched token ids
    emb_ref : VMEM (V, E)        -- embedding table (resident)
    wih_ref : VMEM (E, H)        -- input->hidden weight  (PyTorch W_ih^T)
    whh_ref : VMEM (H, H)        -- hidden->hidden weight (PyTorch W_hh^T)
    bias_ref: VMEM (1, H)        -- b_ih + b_hh
    o_ref   : VMEM (1, L, H)     -- softmax(h_t) over the hidden dim
    """
    b = pl.program_id(0)
    _, L, H = o_ref.shape

    # (1) In-kernel embedding gather: L dynamic sublane row-reads from the
    #     VMEM-resident table (ids come from SMEM scalars).
    rows = [emb_ref[pl.ds(tok_ref[b, t], 1), :] for t in range(L)]
    x = jnp.concatenate(rows, axis=0)                                  # (L, E)

    # (2) Hoisted input projection: one MXU matmul for all timesteps,
    #     off the serial recurrence.
    xproj = (jnp.dot(x, wih_ref[...], preferred_element_type=jnp.float32)
             + bias_ref[...])                                          # (L, H)

    # (3) Serial recurrence. L is small and static -> fully unrolled; the
    #     hidden state is a loop-carried vreg value, no VMEM round-trips.
    whh = whh_ref[...]
    h = jnp.zeros((1, H), jnp.float32)
    hs = []
    for t in range(L):
        h = jnp.tanh(xproj[t:t + 1, :]
                     + jnp.dot(h, whh, preferred_element_type=jnp.float32))
        hs.append(h)
    h_all = jnp.concatenate(hs, axis=0)                                # (L, H)

    # (4) Softmax over H, vectorized over all timesteps, exact divide.
    m = jnp.max(h_all, axis=-1, keepdims=True)
    e = jnp.exp(h_all - m)
    s = e / jnp.sum(e, axis=-1, keepdims=True)

    # (5) Single slab store for this batch element.
    o_ref[0] = s.astype(o_ref.dtype)


def text_rnn_forward(x_tokens, emb_table, w_ih, w_hh, b_ih, b_hh):
    """TextRNN forward.

    x_tokens : (B, L) int token ids
    emb_table: (V, E) f32
    w_ih     : (E, H) f32  (= PyTorch weight_ih_l0.T)
    w_hh     : (H, H) f32  (= PyTorch weight_hh_l0.T)
    b_ih,b_hh: (H,)   f32
    returns  : (B, H, L) f32  softmax over the H axis
    """
    B, L = x_tokens.shape
    V, E = emb_table.shape
    H = w_hh.shape[0]

    # Tiny weight-only prep (constant-foldable / hoistable in real use).
    bias = (b_ih + b_hh).reshape(1, H).astype(jnp.float32)

    out_blh = pl.pallas_call(
        _textrnn_kernel,
        out_shape=jax.ShapeDtypeStruct((B, L, H), jnp.float32),
        grid_spec=pltpu.PrefetchScalarGridSpec(
            num_scalar_prefetch=1,                    # token ids -> SMEM
            grid=(B,),                                # batch-parallel grid
            in_specs=[
                pl.BlockSpec((V, E), lambda b, tok: (0, 0)),  # emb table
                pl.BlockSpec((E, H), lambda b, tok: (0, 0)),  # W_ih
                pl.BlockSpec((H, H), lambda b, tok: (0, 0)),  # W_hh
                pl.BlockSpec((1, H), lambda b, tok: (0, 0)),  # bias
            ],
            out_specs=pl.BlockSpec((1, L, H), lambda b, tok: (b, 0, 0)),
        ),
        compiler_params=pltpu.CompilerParams(
            dimension_semantics=("parallel",),        # 2x on v7x (2 TCs)
        ),
    )(x_tokens.astype(jnp.int32), emb_table, w_ih, w_hh, bias)   # (B, L, H)

    # (B, L, H) -> (B, H, L)  == PyTorch permute(0, 2, 1).
    return jnp.transpose(out_blh, (0, 2, 1))


def _reference_forward(x_tokens, emb_table, w_ih, w_hh, b_ih, b_hh):
    """Pure-JAX reference (lax.scan) for correctness checking."""
    emb = jnp.take(emb_table, x_tokens, axis=0)               # (B, L, E)
    B, L, E = emb.shape
    H = w_hh.shape[0]
    bias = b_ih + b_hh

    def step(h, x_t):
        h_new = jnp.tanh(x_t @ w_ih + h @ w_hh + bias)
        return h_new, h_new

    xs = jnp.transpose(emb, (1, 0, 2))                        # (L, B, E)
    _, hs = jax.lax.scan(step, jnp.zeros((B, H), jnp.float32), xs)  # (L, B, H)
    out = jnp.transpose(hs, (1, 2, 0))                        # (B, H, L)
    return jax.nn.softmax(out, axis=1)


if __name__ == "__main__":
    # Small deterministic config consistent with the module's __init__.
    vocab_size = 50
    embed_size = 16
    hidden_dim = 32
    B, L = 2, 8

    key = jax.random.PRNGKey(0)
    k_emb, k_wih, k_whh, k_bih, k_bhh, k_tok = jax.random.split(key, 6)

    emb_table = jax.random.normal(k_emb, (vocab_size, embed_size), jnp.float32) * 0.1
    w_ih = jax.random.normal(k_wih, (embed_size, hidden_dim), jnp.float32) * 0.1
    w_hh = jax.random.normal(k_whh, (hidden_dim, hidden_dim), jnp.float32) * 0.1
    b_ih = jax.random.normal(k_bih, (hidden_dim,), jnp.float32) * 0.1
    b_hh = jax.random.normal(k_bhh, (hidden_dim,), jnp.float32) * 0.1

    x_tokens = jax.random.randint(k_tok, (B, L), 0, vocab_size, jnp.int32)

    out = text_rnn_forward(x_tokens, emb_table, w_ih, w_hh, b_ih, b_hh)
    out = jax.block_until_ready(out)

    ref = _reference_forward(x_tokens, emb_table, w_ih, w_hh, b_ih, b_hh)
    assert out.shape == (B, hidden_dim, L), out.shape
    # Exact softmax divide in-kernel; remaining slack covers MXU precision
    # differences between the kernel and the default-precision XLA reference.
    assert jnp.allclose(out, ref, atol=1e-3, rtol=1e-3), "mismatch vs reference"
    # Softmax over dim=1 (H): every (b, l) column must sum to 1.
    col_sums = jnp.sum(out, axis=1)
    assert jnp.allclose(col_sums, jnp.ones_like(col_sums), atol=1e-4), "softmax sums"

    print("KERNEL_OK")
</pallas_src>

<mosaic_0001>
module attributes {stable_mosaic.version = 11 : i64} {
  func.func @_textrnn_kernel(%arg0: i32, %arg1: memref<2x8xi32, #tpu.memory_space<smem>>, %arg2: memref<50x16xf32, #tpu.memory_space<vmem>>, %arg3: memref<16x32xf32, #tpu.memory_space<vmem>>, %arg4: memref<32x32xf32, #tpu.memory_space<vmem>>, %arg5: memref<1x32xf32, #tpu.memory_space<vmem>>, %arg6: memref<1x8x32xf32, #tpu.memory_space<vmem>>) attributes {dimension_semantics = [#tpu.dimension_semantics<parallel>], iteration_bounds = array<i64: 2>, scalar_prefetch = 1 : i64, scratch_operands = 0 : i64, tpu.core_type = #tpu.core_type<tc>, window_params = [{pipeline_mode = #tpu.pipeline_mode<synchronous>, transform_indices = @transform_0, window_bounds = array<i64: 50, 16>}, {pipeline_mode = #tpu.pipeline_mode<synchronous>, transform_indices = @transform_1, window_bounds = array<i64: 16, 32>}, {pipeline_mode = #tpu.pipeline_mode<synchronous>, transform_indices = @transform_2, window_bounds = array<i64: 32, 32>}, {pipeline_mode = #tpu.pipeline_mode<synchronous>, transform_indices = @transform_3, window_bounds = array<i64: 1, 32>}, {transform_indices = @transform_4, window_bounds = array<i64: 1, 8, 32>}]} {
    %0 = arith.index_cast %arg0 : i32 to index
    %c0 = arith.constant 0 : index
    %1 = memref.load %arg1[%0, %c0] : memref<2x8xi32, #tpu.memory_space<smem>>
    %2 = arith.index_cast %1 : i32 to index
    %c0_0 = arith.constant 0 : index
    %3 = vector.load %arg2[%2, %c0_0] : memref<50x16xf32, #tpu.memory_space<vmem>>, vector<1x16xf32>
    %4 = arith.index_cast %arg0 : i32 to index
    %c1 = arith.constant 1 : index
    %5 = memref.load %arg1[%4, %c1] : memref<2x8xi32, #tpu.memory_space<smem>>
    %6 = arith.index_cast %5 : i32 to index
    %c0_1 = arith.constant 0 : index
    %7 = vector.load %arg2[%6, %c0_1] : memref<50x16xf32, #tpu.memory_space<vmem>>, vector<1x16xf32>
    %8 = arith.index_cast %arg0 : i32 to index
    %c2 = arith.constant 2 : index
    %9 = memref.load %arg1[%8, %c2] : memref<2x8xi32, #tpu.memory_space<smem>>
    %10 = arith.index_cast %9 : i32 to index
    %c0_2 = arith.constant 0 : index
    %11 = vector.load %arg2[%10, %c0_2] : memref<50x16xf32, #tpu.memory_space<vmem>>, vector<1x16xf32>
    %12 = arith.index_cast %arg0 : i32 to index
    %c3 = arith.constant 3 : index
    %13 = memref.load %arg1[%12, %c3] : memref<2x8xi32, #tpu.memory_space<smem>>
    %14 = arith.index_cast %13 : i32 to index
    %c0_3 = arith.constant 0 : index
    %15 = vector.load %arg2[%14, %c0_3] : memref<50x16xf32, #tpu.memory_space<vmem>>, vector<1x16xf32>
    %16 = arith.index_cast %arg0 : i32 to index
    %c4 = arith.constant 4 : index
    %17 = memref.load %arg1[%16, %c4] : memref<2x8xi32, #tpu.memory_space<smem>>
    %18 = arith.index_cast %17 : i32 to index
    %c0_4 = arith.constant 0 : index
    %19 = vector.load %arg2[%18, %c0_4] : memref<50x16xf32, #tpu.memory_space<vmem>>, vector<1x16xf32>
    %20 = arith.index_cast %arg0 : i32 to index
    %c5 = arith.constant 5 : index
    %21 = memref.load %arg1[%20, %c5] : memref<2x8xi32, #tpu.memory_space<smem>>
    %22 = arith.index_cast %21 : i32 to index
    %c0_5 = arith.constant 0 : index
    %23 = vector.load %arg2[%22, %c0_5] : memref<50x16xf32, #tpu.memory_space<vmem>>, vector<1x16xf32>
    %24 = arith.index_cast %arg0 : i32 to index
    %c6 = arith.constant 6 : index
    %25 = memref.load %arg1[%24, %c6] : memref<2x8xi32, #tpu.memory_space<smem>>
    %26 = arith.index_cast %25 : i32 to index
    %c0_6 = arith.constant 0 : index
    %27 = vector.load %arg2[%26, %c0_6] : memref<50x16xf32, #tpu.memory_space<vmem>>, vector<1x16xf32>
    %28 = arith.index_cast %arg0 : i32 to index
    %c7 = arith.constant 7 : index
    %29 = memref.load %arg1[%28, %c7] : memref<2x8xi32, #tpu.memory_space<smem>>
    %30 = arith.index_cast %29 : i32 to index
    %c0_7 = arith.constant 0 : index
    %31 = vector.load %arg2[%30, %c0_7] : memref<50x16xf32, #tpu.memory_space<vmem>>, vector<1x16xf32>
    %32 = tpu.concatenate %3, %7, %11, %15, %19, %23, %27, %31 in 0 : vector<1x16xf32>, vector<1x16xf32>, vector<1x16xf32>, vector<1x16xf32>, vector<1x16xf32>, vector<1x16xf32>, vector<1x16xf32>, vector<1x16xf32> -> vector<8x16xf32>
    %c0_8 = arith.constant 0 : index
    %c0_9 = arith.constant 0 : index
    %33 = vector.load %arg3[%c0_8, %c0_9] : memref<16x32xf32, #tpu.memory_space<vmem>>, vector<16x32xf32>
    %cst = arith.constant dense<0.000000e+00> : vector<8x32xf32>
    %34 = tpu.matmul %32, %33, %cst {dimension_numbers = #tpu.dot_dimension_numbers<[1], [0], [0], [1], [0, 0, 1, 1], [], []>} : vector<8x16xf32>, vector<16x32xf32>, vector<8x32xf32> -> vector<8x32xf32>
    %c0_10 = arith.constant 0 : index
    %c0_11 = arith.constant 0 : index
    %35 = vector.load %arg5[%c0_10, %c0_11] : memref<1x32xf32, #tpu.memory_space<vmem>>, vector<1x32xf32>
    %36 = vector.broadcast %35 : vector<1x32xf32> to vector<8x32xf32>
    %37 = arith.addf %34, %36 : vector<8x32xf32>
    %c0_12 = arith.constant 0 : index
    %c0_13 = arith.constant 0 : index
    %38 = vector.load %arg4[%c0_12, %c0_13] : memref<32x32xf32, #tpu.memory_space<vmem>>, vector<32x32xf32>
    %cst_14 = arith.constant 0.000000e+00 : f32
    %39 = vector.broadcast %cst_14 : f32 to vector<1x32xf32>
    %40 = vector.extract_strided_slice %37 {offsets = [0, 0], sizes = [1, 32], strides = [1, 1]} : vector<8x32xf32> to vector<1x32xf32>
    %cst_15 = arith.constant dense<0.000000e+00> : vector<1x32xf32>
    %41 = tpu.matmul %39, %38, %cst_15 {dimension_numbers = #tpu.dot_dimension_numbers<[1], [0], [0], [1], [0, 0, 1, 1], [], []>} : vector<1x32xf32>, vector<32x32xf32>, vector<1x32xf32> -> vector<1x32xf32>
    %42 = arith.addf %40, %41 : vector<1x32xf32>
    %43 = math.tanh %42 : vector<1x32xf32>
    %44 = vector.extract_strided_slice %37 {offsets = [1, 0], sizes = [1, 32], strides = [1, 1]} : vector<8x32xf32> to vector<1x32xf32>
    %cst_16 = arith.constant dense<0.000000e+00> : vector<1x32xf32>
    %45 = tpu.matmul %43, %38, %cst_16 {dimension_numbers = #tpu.dot_dimension_numbers<[1], [0], [0], [1], [0, 0, 1, 1], [], []>} : vector<1x32xf32>, vector<32x32xf32>, vector<1x32xf32> -> vector<1x32xf32>
    %46 = arith.addf %44, %45 : vector<1x32xf32>
    %47 = math.tanh %46 : vector<1x32xf32>
    %48 = vector.extract_strided_slice %37 {offsets = [2, 0], sizes = [1, 32], strides = [1, 1]} : vector<8x32xf32> to vector<1x32xf32>
    %cst_17 = arith.constant dense<0.000000e+00> : vector<1x32xf32>
    %49 = tpu.matmul %47, %38, %cst_17 {dimension_numbers = #tpu.dot_dimension_numbers<[1], [0], [0], [1], [0, 0, 1, 1], [], []>} : vector<1x32xf32>, vector<32x32xf32>, vector<1x32xf32> -> vector<1x32xf32>
    %50 = arith.addf %48, %49 : vector<1x32xf32>
    %51 = math.tanh %50 : vector<1x32xf32>
    %52 = vector.extract_strided_slice %37 {offsets = [3, 0], sizes = [1, 32], strides = [1, 1]} : vector<8x32xf32> to vector<1x32xf32>
    %cst_18 = arith.constant dense<0.000000e+00> : vector<1x32xf32>
    %53 = tpu.matmul %51, %38, %cst_18 {dimension_numbers = #tpu.dot_dimension_numbers<[1], [0], [0], [1], [0, 0, 1, 1], [], []>} : vector<1x32xf32>, vector<32x32xf32>, vector<1x32xf32> -> vector<1x32xf32>
    %54 = arith.addf %52, %53 : vector<1x32xf32>
    %55 = math.tanh %54 : vector<1x32xf32>
    %56 = vector.extract_strided_slice %37 {offsets = [4, 0], sizes = [1, 32], strides = [1, 1]} : vector<8x32xf32> to vector<1x32xf32>
    %cst_19 = arith.constant dense<0.000000e+00> : vector<1x32xf32>
    %57 = tpu.matmul %55, %38, %cst_19 {dimension_numbers = #tpu.dot_dimension_numbers<[1], [0], [0], [1], [0, 0, 1, 1], [], []>} : vector<1x32xf32>, vector<32x32xf32>, vector<1x32xf32> -> vector<1x32xf32>
    %58 = arith.addf %56, %57 : vector<1x32xf32>
    %59 = math.tanh %58 : vector<1x32xf32>
    %60 = vector.extract_strided_slice %37 {offsets = [5, 0], sizes = [1, 32], strides = [1, 1]} : vector<8x32xf32> to vector<1x32xf32>
    %cst_20 = arith.constant dense<0.000000e+00> : vector<1x32xf32>
    %61 = tpu.matmul %59, %38, %cst_20 {dimension_numbers = #tpu.dot_dimension_numbers<[1], [0], [0], [1], [0, 0, 1, 1], [], []>} : vector<1x32xf32>, vector<32x32xf32>, vector<1x32xf32> -> vector<1x32xf32>
    %62 = arith.addf %60, %61 : vector<1x32xf32>
    %63 = math.tanh %62 : vector<1x32xf32>
    %64 = vector.extract_strided_slice %37 {offsets = [6, 0], sizes = [1, 32], strides = [1, 1]} : vector<8x32xf32> to vector<1x32xf32>
    %cst_21 = arith.constant dense<0.000000e+00> : vector<1x32xf32>
    %65 = tpu.matmul %63, %38, %cst_21 {dimension_numbers = #tpu.dot_dimension_numbers<[1], [0], [0], [1], [0, 0, 1, 1], [], []>} : vector<1x32xf32>, vector<32x32xf32>, vector<1x32xf32> -> vector<1x32xf32>
    %66 = arith.addf %64, %65 : vector<1x32xf32>
    %67 = math.tanh %66 : vector<1x32xf32>
    %68 = vector.extract_strided_slice %37 {offsets = [7, 0], sizes = [1, 32], strides = [1, 1]} : vector<8x32xf32> to vector<1x32xf32>
    %cst_22 = arith.constant dense<0.000000e+00> : vector<1x32xf32>
    %69 = tpu.matmul %67, %38, %cst_22 {dimension_numbers = #tpu.dot_dimension_numbers<[1], [0], [0], [1], [0, 0, 1, 1], [], []>} : vector<1x32xf32>, vector<32x32xf32>, vector<1x32xf32> -> vector<1x32xf32>
    %70 = arith.addf %68, %69 : vector<1x32xf32>
    %71 = math.tanh %70 : vector<1x32xf32>
    %72 = tpu.concatenate %43, %47, %51, %55, %59, %63, %67, %71 in 0 : vector<1x32xf32>, vector<1x32xf32>, vector<1x32xf32>, vector<1x32xf32>, vector<1x32xf32>, vector<1x32xf32>, vector<1x32xf32>, vector<1x32xf32> -> vector<8x32xf32>
    %cst_23 = arith.constant dense<0xFF800000> : vector<8xf32>
    %73 = vector.multi_reduction <maximumf>, %72, %cst_23 [1] : vector<8x32xf32> to vector<8xf32>
    %74 = vector.shape_cast %73 : vector<8xf32> to vector<8x1xf32>
    %75 = vector.broadcast %74 : vector<8x1xf32> to vector<8x32xf32>
    %76 = arith.subf %72, %75 : vector<8x32xf32>
    %77 = math.exp %76 : vector<8x32xf32>
    %cst_24 = arith.constant dense<0.000000e+00> : vector<8xf32>
    %78 = vector.multi_reduction <add>, %77, %cst_24 [1] : vector<8x32xf32> to vector<8xf32>
    %79 = vector.shape_cast %78 : vector<8xf32> to vector<8x1xf32>
    %80 = vector.broadcast %79 : vector<8x1xf32> to vector<8x32xf32>
    %81 = arith.divf %77, %80 : vector<8x32xf32>
    %c0_25 = arith.constant 0 : index
    %c0_26 = arith.constant 0 : index
    %c0_27 = arith.constant 0 : index
    %82 = vector.load %arg6[%c0_25, %c0_26, %c0_27] : memref<1x8x32xf32, #tpu.memory_space<vmem>>, vector<1x8x32xf32>
    %83 = vector.shape_cast %82 : vector<1x8x32xf32> to vector<8x32xf32>
    %84 = vector.shape_cast %81 : vector<8x32xf32> to vector<1x8x32xf32>
    tpu.vector_store %arg6[%c0_25, %c0_26, %c0_27], %84 {strides = array<i32>} : memref<1x8x32xf32, #tpu.memory_space<vmem>>, vector<1x8x32xf32>,
    return
  }
  func.func @transform_0(%arg0: i32, %arg1: memref<2x8xi32, #tpu.memory_space<smem>>) -> (i32, i32) {
    %c0_i32 = arith.constant 0 : i32
    %c0_i32_0 = arith.constant 0 : i32
    %c0_i32_1 = arith.constant 0 : i32
    return %c0_i32, %c0_i32_0 : i32, i32
  }
  func.func @transform_1(%arg0: i32, %arg1: memref<2x8xi32, #tpu.memory_space<smem>>) -> (i32, i32) {
    %c0_i32 = arith.constant 0 : i32
    %c0_i32_0 = arith.constant 0 : i32
    %c0_i32_1 = arith.constant 0 : i32
    return %c0_i32, %c0_i32_0 : i32, i32
  }
  func.func @transform_2(%arg0: i32, %arg1: memref<2x8xi32, #tpu.memory_space<smem>>) -> (i32, i32) {
    %c0_i32 = arith.constant 0 : i32
    %c0_i32_0 = arith.constant 0 : i32
    %c0_i32_1 = arith.constant 0 : i32
    return %c0_i32, %c0_i32_0 : i32, i32
  }
  func.func @transform_3(%arg0: i32, %arg1: memref<2x8xi32, #tpu.memory_space<smem>>) -> (i32, i32) {
    %c0_i32 = arith.constant 0 : i32
    %c0_i32_0 = arith.constant 0 : i32
    %c0_i32_1 = arith.constant 0 : i32
    return %c0_i32, %c0_i32_0 : i32, i32
  }
  func.func @transform_4(%arg0: i32, %arg1: memref<2x8xi32, #tpu.memory_space<smem>>) -> (i32, i32, i32) {
    %c0_i32 = arith.constant 0 : i32
    %c0_i32_0 = arith.constant 0 : i32
    %c0_i32_1 = arith.constant 0 : i32
    return %arg0, %c0_i32, %c0_i32_0 : i32, i32, i32
  }
}

</mosaic_0001>

<llo_original>
// kernel: tpu_custom_call.1
$region0: #{tpu_custom_call.1}
  #allocation0 [shape = 'u32[]', space=smem, size = 0x4, offset = 0x4, fixed_abs, tag = 'smem constant byte address 0x4 - core index']
  #allocation1 [shape = 'u32[72,128]{1,0:T(1,128)}', space=vmem, size = 0x9000, scoped, tag = 'internal scratch']
  #allocation2 [shape = 's32[1]{0}', space=sflag, size = 0x4, scoped, tag = 'scoped memory for tpu_custom_call.1']
  #allocation3 [shape = 'u8[1024]{0}', space=smem, size = 0x400, scoped, tag = 'prefetched SMEM operand 0']
  %s0 = inlined_call_operand.vmem [shape: s32[2,8], index: 0, kind: input, shape index: {}]
  %s1 = inlined_call_operand.vmem [shape: f32[50,16], index: 1, kind: input, shape index: {}]
  %s2 = inlined_call_operand.vmem [shape: f32[16,32], index: 2, kind: input, shape index: {}]
  %s3 = inlined_call_operand.vmem [shape: f32[32,32], index: 3, kind: input, shape index: {}]
  %s4 = inlined_call_operand.vmem [shape: f32[1,32], index: 4, kind: input, shape index: {}]
  %s5 = inlined_call_operand.hbm [shape: f32[2,8,32], index: 5, kind: output, shape index: {}]
  %s6 = sld [smem:[#allocation0]]
  $region49: #{tpu_custom_call.1} parent=0
    _
  %s8 = ssub.s32 1, %s6
  %s9 = scalar_select 0, %s8, %s6
  %s11 = sshll.u32 %s0, 4
  %s12 = int_to_ptr.vmem [resolvable:$true] %s11
  %14 = dma.vmem_to_smem %s12, 32, [#allocation3], [#allocation2]
  %16 = dma.done [#allocation2], 32
  %17 = sfence
  $region1: #{tpu_custom_call.1} parent=0
    #allocation4 [shape = 'u8[8192]{0}', space=vmem, size = 0x2000, scoped, tag = 'output window, operand 0']
    #allocation5 [shape = 's32[2]{0}', space=sflag, size = 0x8, scoped, tag = 'scoped memory for tpu_custom_call.1']
    %18 = vsyncpa [#allocation5], 0
    %s19 = scalar_lea.sflag [#allocation5], 1
    %20 = vsyncpa %s19, 0
    loop: start=0, step=1, limit=4
    $region2: #{tpu_custom_call.1} parent=1 // loop_pre_header
      _
    $region3: #{tpu_custom_call.1} parent=1 // loop_header
      %s22 = sphi 0, %s26
      %p23 = scmp.ge.s32.totalorder %s22, 4
      %s30 = sphi 0, %s30
      %s32 = sphi 0, %s30
      %s33 = sphi 0, %s32
      %s47 = sphi 0, %s33
      %s51 = sphi 0, %s51
      %s53 = sphi 0, %s51
      %s54 = sphi 0, %s53
      %s68 = sphi 0, %s54
      %s72 = sphi 0, %s72
      %s74 = sphi 0, %s72
      %s75 = sphi 0, %s74
      %s89 = sphi 0, %s75
      %s93 = sphi 0, %s93
      %s95 = sphi 0, %s93
      %s96 = sphi 0, %s95
      %s110 = sphi 0, %s96
      %s116 = sphi 0, %s118
      %s119 = sphi 0, %s116
      %s120 = sphi 0, %s119
      %s136 = sphi 0, %s120
    $region4: #{tpu_custom_call.1} parent=1 // loop_header_branch
      %25 = sbr.rel (%p23) target = $region8
    $region5: #{tpu_custom_call.1} parent=1 // loop_body
      %s27 = ssub.s32 %s22, 1
      %s28 = ssub.s32 %s22, 2
      %s29 = sadd.s32 %s22, 1
      %s31 = sadd.s32 %s30, 1
      %p34 = scmp.eq.s32.totalorder %s22, 1
      %p35 = scmp.ne.s32.totalorder %s30, %s32
      %p36 = scmp.eq.s32.totalorder %s22, 0
      %p37 = por %p35, %p36
      %p38 = scmp.ne.s32.totalorder %s30, %s32
      %p39 = scmp.eq.s32.totalorder %s27, 1
      %p40 = por %p38, %p39
      %p41 = scmp.ne.s32.totalorder %s32, %s33
      %p42 = scmp.eq.s32.totalorder %s27, 0
      %p43 = por %p41, %p42
      %p44 = scmp.ne.s32.totalorder %s32, %s33
      %p45 = scmp.eq.s32.totalorder %s28, 1
      %p46 = por %p44, %p45
      %p48 = scmp.ne.s32.totalorder %s33, %s47
      %p49 = scmp.eq.s32.totalorder %s28, 0
      %p50 = por %p48, %p49
      %s52 = sadd.s32 %s51, 1
      %p55 = scmp.eq.s32.totalorder %s22, 1
      %p56 = scmp.ne.s32.totalorder %s51, %s53
      %p57 = scmp.eq.s32.totalorder %s22, 0
      %p58 = por %p56, %p57
      %p59 = scmp.ne.s32.totalorder %s51, %s53
      %p60 = scmp.eq.s32.totalorder %s27, 1
      %p61 = por %p59, %p60
      %p62 = scmp.ne.s32.totalorder %s53, %s54
      %p63 = scmp.eq.s32.totalorder %s27, 0
      %p64 = por %p62, %p63
      %p65 = scmp.ne.s32.totalorder %s53, %s54
      %p66 = scmp.eq.s32.totalorder %s28, 1
      %p67 = por %p65, %p66
      %p69 = scmp.ne.s32.totalorder %s54, %s68
      %p70 = scmp.eq.s32.totalorder %s28, 0
      %p71 = por %p69, %p70
      %s73 = sadd.s32 %s72, 1
      %p76 = scmp.eq.s32.totalorder %s22, 1
      %p77 = scmp.ne.s32.totalorder %s72, %s74
      %p78 = scmp.eq.s32.totalorder %s22, 0
      %p79 = por %p77, %p78
      %p80 = scmp.ne.s32.totalorder %s72, %s74
      %p81 = scmp.eq.s32.totalorder %s27, 1
      %p82 = por %p80, %p81
      %p83 = scmp.ne.s32.totalorder %s74, %s75
      %p84 = scmp.eq.s32.totalorder %s27, 0
      %p85 = por %p83, %p84
      %p86 = scmp.ne.s32.totalorder %s74, %s75
      %p87 = scmp.eq.s32.totalorder %s28, 1
      %p88 = por %p86, %p87
      %p90 = scmp.ne.s32.totalorder %s75, %s89
      %p91 = scmp.eq.s32.totalorder %s28, 0
      %p92 = por %p90, %p91
      %s94 = sadd.s32 %s93, 1
      %p97 = scmp.eq.s32.totalorder %s22, 1
      %p98 = scmp.ne.s32.totalorder %s93, %s95
      %p99 = scmp.eq.s32.totalorder %s22, 0
      %p100 = por %p98, %p99
      %p101 = scmp.ne.s32.totalorder %s93, %s95
      %p102 = scmp.eq.s32.totalorder %s27, 1
      %p103 = por %p101, %p102
      %p104 = scmp.ne.s32.totalorder %s95, %s96
      %p105 = scmp.eq.s32.totalorder %s27, 0
      %p106 = por %p104, %p105
      %p107 = scmp.ne.s32.totalorder %s95, %s96
      %p108 = scmp.eq.s32.totalorder %s28, 1
      %p109 = por %p107, %p108
      %p111 = scmp.ne.s32.totalorder %s96, %s110
      %p112 = scmp.eq.s32.totalorder %s28, 0
      %p113 = por %p111, %p112
      %s114 = ssub.s32 %s22, %s29
      %p115 = scmp.eq.s32.totalorder %s114, 0
      %s117 = sadd.s32 %s116, 1
      %s118 = scalar_select %p115, %s116, %s117
      %p121 = pneg %p115
      %p122 = scmp.eq.s32.totalorder %s22, 1
      %p123 = por %p121, %p122
      %p124 = scmp.ne.s32.totalorder %s116, %s119
      %p125 = scmp.eq.s32.totalorder %s22, 0
      %p126 = por %p124, %p125
      %p127 = scmp.ne.s32.totalorder %s116, %s119
      %p128 = scmp.eq.s32.totalorder %s27, 1
      %p129 = por %p127, %p128
      %p130 = scmp.ne.s32.totalorder %s119, %s120
      %p131 = scmp.eq.s32.totalorder %s27, 0
      %p132 = por %p130, %p131
      %p133 = scmp.ne.s32.totalorder %s119, %s120
      %p134 = scmp.eq.s32.totalorder %s28, 1
      %p135 = por %p133, %p134
      %p137 = scmp.ne.s32.totalorder %s120, %s136
      %p138 = scmp.eq.s32.totalorder %s28, 0
      %p139 = por %p137, %p138
      %p140 = scmp.le.s32.totalorder 1, %s22
      %p141 = scmp.lt.s32.totalorder %s22, 3
      %p142 = pnand %p140, %p141
      %p143 = pneg %p142
      // Predicated region
      $region9: #{tpu_custom_call.1} parent=5 // pred_check
        _
      $region10: #{tpu_custom_call.1} parent=5 // pred_check_branch
        %145 = sbr.rel (%p142) target = $region12
      $region11: #{tpu_custom_call.1} parent=5 // pred_region
        %s146 = ssub.s32 %s22, 1
        // Predicated region
        $region13: #{tpu_custom_call.1} parent=11 // pred_check
          %p147 = pneg %p43
        $region14: #{tpu_custom_call.1} parent=11 // pred_check_branch
          %149 = sbr.rel (%p147) target = $region16
        $region15: #{tpu_custom_call.1} parent=11 // pred_region
          _
        $region16: #{tpu_custom_call.1} parent=11 // pred_fallthru
          _
        // Predicated region
        $region17: #{tpu_custom_call.1} parent=11 // pred_check
          %p150 = pneg %p64
        $region18: #{tpu_custom_call.1} parent=11 // pred_check_branch
          %152 = sbr.rel (%p150) target = $region20
        $region19: #{tpu_custom_call.1} parent=11 // pred_region
          _
        $region20: #{tpu_custom_call.1} parent=11 // pred_fallthru
          _
        // Predicated region
        $region21: #{tpu_custom_call.1} parent=11 // pred_check
          %p153 = pneg %p85
        $region22: #{tpu_custom_call.1} parent=11 // pred_check_branch
          %155 = sbr.rel (%p153) target = $region24
        $region23: #{tpu_custom_call.1} parent=11 // pred_region
          _
        $region24: #{tpu_custom_call.1} parent=11 // pred_fallthru
          _
        // Predicated region
        $region25: #{tpu_custom_call.1} parent=11 // pred_check
          %p156 = pneg %p106
        $region26: #{tpu_custom_call.1} parent=11 // pred_check_branch
          %158 = sbr.rel (%p156) target = $region28
        $region27: #{tpu_custom_call.1} parent=11 // pred_region
          _
        $region28: #{tpu_custom_call.1} parent=11 // pred_fallthru
          _
      $region12: #{tpu_custom_call.1} parent=5 // pred_fallthru
        _
      %p159 = scmp.lt.s32.totalorder %s22, 2
      // Predicated region
      $region29: #{tpu_custom_call.1} parent=5 // pred_check
        %p160 = pneg %p159
      $region30: #{tpu_custom_call.1} parent=5 // pred_check_branch
        %162 = sbr.rel (%p160) target = $region32
      $region31: #{tpu_custom_call.1} parent=5 // pred_region
        _
      $region32: #{tpu_custom_call.1} parent=5 // pred_fallthru
        _
      %p163 = scmp.le.s32.totalorder 1, %s22
      %p164 = scmp.lt.s32.totalorder %s22, 3
      %p165 = pnand %p163, %p164
      %p166 = pneg %p165
      // Predicated region
      $region33: #{tpu_custom_call.1} parent=5 // pred_check
        _
      $region34: #{tpu_custom_call.1} parent=5 // pred_check_branch
        %168 = sbr.rel (%p165) target = $region36
      $region35: #{tpu_custom_call.1} parent=5 // pred_region
        %s169 = ssub.s32 %s22, 1
        %p170 = pneg %p43
        %p171 = pneg %p40
        %p172 = pneg %p64
        %p173 = pneg %p61
        %p174 = pneg %p85
        %p175 = pneg %p82
        %p176 = pneg %p106
        %p177 = pneg %p103
        %p178 = pneg %p132
        %p179 = pneg %p129
        %s180 = sand.u32 %s119, 1
        %s181 = scalar_lea.sflag [#allocation5], %s180
        %s182 = sand.u32 %s119, 1
        %s183 = smul.addr %s182, 8
        %s184 = scalar_lea.vmem [#allocation4], %s183
        %s185 = smul.u32 %s27, 128
        %s186 = sld [smem:[#allocation3 + %s185]]
        %s187 = scalar_lea.vmem %s1, %s186
        %v188 = vld [vmem:[%s187] sm:$0x1]
        %s189 = sadd.s32 %s185, 1
        %s190 = sld [smem:[#allocation3 + %s189]]
        %s191 = scalar_lea.vmem %s1, %s190
        %v192 = vld [vmem:[%s191] sm:$0x1]
        %s193 = sadd.s32 %s185, 2
        %s194 = sld [smem:[#allocation3 + %s193]]
        %s195 = scalar_lea.vmem %s1, %s194
        %v196 = vld [vmem:[%s195] sm:$0x1]
        %s197 = sadd.s32 %s185, 3
        %s198 = sld [smem:[#allocation3 + %s197]]
        %s199 = scalar_lea.vmem %s1, %s198
        %v200 = vld [vmem:[%s199] sm:$0x1]
        %s201 = sadd.s32 %s185, 4
        %s202 = sld [smem:[#allocation3 + %s201]]
        %s203 = scalar_lea.vmem %s1, %s202
        %v204 = vld [vmem:[%s203] sm:$0x1]
        %s205 = sadd.s32 %s185, 5
        %s206 = sld [smem:[#allocation3 + %s205]]
        %s207 = scalar_lea.vmem %s1, %s206
        %v208 = vld [vmem:[%s207] sm:$0x1]
        %s209 = sadd.s32 %s185, 6
        %s210 = sld [smem:[#allocation3 + %s209]]
        %s211 = scalar_lea.vmem %s1, %s210
        %v212 = vld [vmem:[%s211] sm:$0x1]
        %s213 = sadd.s32 %s185, 7
        %s214 = sld [smem:[#allocation3 + %s213]]
        %s215 = scalar_lea.vmem %s1, %s214
        %v216 = vld [vmem:[%s215] sm:$0x1]
        %v218 = vrot.slane %v192, 7
        %v221 = vrot.slane %v196, 6
        %v224 = vrot.slane %v200, 5
        %v227 = vrot.slane %v204, 4
        %v230 = vrot.slane %v208, 3
        %v233 = vrot.slane %v212, 2
        %v236 = vrot.slane %v216, 1
        %vm238 = vcmask 1040384
        %v239 = vsel %vm238, %v188, %v218
        %vm240 = vcmask 1041408
        %v241 = vsel %vm240, %v239, %v221
        %vm242 = vcmask 1042432
        %v243 = vsel %vm242, %v241, %v224
        %vm244 = vcmask 1043456
        %v245 = vsel %vm244, %v243, %v227
        %vm246 = vcmask 1044480
        %v247 = vsel %vm246, %v245, %v230
        %vm248 = vcmask 1045504
        %v249 = vsel %vm248, %v247, %v233
        %vm250 = vcmask 1046528
        %v251 = vsel %vm250, %v249, %v236
        %v252 = vld [vmem:[%s2] sm:$0xff]
        %v253 = vld [vmem:[%s2 + $0x8] sm:$0xff]
        %v254 = vld [vmem:[%s4] sm:$0x1]
        %v256 = vperm.slane %v254, 0
        %vm258 = vcmask 130048
        %v260 = vsel %vm258, %v251, 0
        %262 = vmatpush.msra.mxu0 0.0
        %263 = vmatpush.msra.mxu0 0.0
        %264 = vmatpush.msra.mxu0 0.0
        %265 = vmatpush.msra.mxu0 0.0
        %266 = vmatpush.msra.mxu0 0.0
        %267 = vmatpush.msra.mxu0 0.0
        %268 = vmatpush.msra.mxu0 0.0
        %269 = vmatpush.msra.mxu0 0.0
        %270 = vmatpush.msra.mxu0 0.0
        %271 = vmatpush.msra.mxu0 0.0
        %272 = vmatpush.msra.mxu0 0.0
        %273 = vmatpush.msra.mxu0 0.0
        %274 = vmatpush.msra.mxu0 0.0
        %275 = vmatpush.msra.mxu0 0.0
        %276 = vmatpush.msra.mxu0 %v253
        %277 = vmatpush.msra.mxu0 %v252
        %278 = vmatmul.f32.gmra.mxu0 %v260
        %v279 = vpop.f32.mrf.mxu0
        %v280 = vadd.f32 %v256, %v279
        %281 = vdwg.mxu0
        %v282 = vld [vmem:[%s3] sm:$0xff]
        %v283 = vld [vmem:[%s3 + $0x8] sm:$0xff]
        %v284 = vld [vmem:[%s3 + $0x10] sm:$0xff]
        %v285 = vld [vmem:[%s3 + $0x18] sm:$0xff]
        %vm286 = vcmask 261120
        %v288 = vsel %vm286, 0.0, 0
        %290 = vmatpush.msra.mxu0 0.0
        %291 = vmatpush.msra.mxu0 0.0
        %292 = vmatpush.msra.mxu0 0.0
        %293 = vmatpush.msra.mxu0 0.0
        %294 = vmatpush.msra.mxu0 0.0
        %295 = vmatpush.msra.mxu0 0.0
        %296 = vmatpush.msra.mxu0 0.0
        %297 = vmatpush.msra.mxu0 0.0
        %298 = vmatpush.msra.mxu0 0.0
        %299 = vmatpush.msra.mxu0 0.0
        %300 = vmatpush.msra.mxu0 0.0
        %301 = vmatpush.msra.mxu0 0.0
        %302 = vmatpush.msra.mxu0 %v285
        %303 = vmatpush.msra.mxu0 %v284
        %304 = vmatpush.msra.mxu0 %v283
        %305 = vmatpush.msra.mxu0 %v282
        %306 = vmatmul.f32.gmra.mxu0 %v288
        %v307 = vpop.f32.mrf.mxu0
        %v308 = vadd.f32 0.0, %v307
        %309 = vdwg.mxu0
        %v310 = vadd.f32 %v280, %v308
        %v311 = vtanh.pop %v310
        %v313 = vsel %vm286, %v311, 0
        %315 = vmatpush.msra.mxu0 0.0
        %316 = vmatpush.msra.mxu0 0.0
        %317 = vmatpush.msra.mxu0 0.0
        %318 = vmatpush.msra.mxu0 0.0
        %319 = vmatpush.msra.mxu0 0.0
        %320 = vmatpush.msra.mxu0 0.0
        %321 = vmatpush.msra.mxu0 0.0
        %322 = vmatpush.msra.mxu0 0.0
        %323 = vmatpush.msra.mxu0 0.0
        %324 = vmatpush.msra.mxu0 0.0
        %325 = vmatpush.msra.mxu0 0.0
        %326 = vmatpush.msra.mxu0 0.0
        %327 = vmatpush.msra.mxu0 %v285
        %328 = vmatpush.msra.mxu0 %v284
        %329 = vmatpush.msra.mxu0 %v283
        %330 = vmatpush.msra.mxu0 %v282
        %331 = vmatmul.f32.gmra.mxu0 %v313
        %v332 = vpop.f32.mrf.mxu0
        %v333 = vadd.f32 0.0, %v332
        %334 = vdwg.mxu0
        %v336 = vrot.slane %v333, 7
        %v338 = vadd.f32 %v280, %v336
        %v339 = vtanh.pop %v338
        %v341 = vrot.slane %v339, 1
        %v342 = vsel %vm286, %v341, 0
        %344 = vmatpush.msra.mxu0 0.0
        %345 = vmatpush.msra.mxu0 0.0
        %346 = vmatpush.msra.mxu0 0.0
        %347 = vmatpush.msra.mxu0 0.0
        %348 = vmatpush.msra.mxu0 0.0
        %349 = vmatpush.msra.mxu0 0.0
        %350 = vmatpush.msra.mxu0 0.0
        %351 = vmatpush.msra.mxu0 0.0
        %352 = vmatpush.msra.mxu0 0.0
        %353 = vmatpush.msra.mxu0 0.0
        %354 = vmatpush.msra.mxu0 0.0
        %355 = vmatpush.msra.mxu0 0.0
        %356 = vmatpush.msra.mxu0 %v285
        %357 = vmatpush.msra.mxu0 %v284
        %358 = vmatpush.msra.mxu0 %v283
        %359 = vmatpush.msra.mxu0 %v282
        %360 = vmatmul.f32.gmra.mxu0 %v342
        %v361 = vpop.f32.mrf.mxu0
        %v362 = vadd.f32 0.0, %v361
        %363 = vdwg.mxu0
        %v365 = vrot.slane %v362, 6
        %v367 = vadd.f32 %v280, %v365
        %v368 = vtanh.pop %v367
        %v370 = vrot.slane %v368, 2
        %v371 = vsel %vm286, %v370, 0
        %373 = vmatpush.msra.mxu0 0.0
        %374 = vmatpush.msra.mxu0 0.0
        %375 = vmatpush.msra.mxu0 0.0
        %376 = vmatpush.msra.mxu0 0.0
        %377 = vmatpush.msra.mxu0 0.0
        %378 = vmatpush.msra.mxu0 0.0
        %379 = vmatpush.msra.mxu0 0.0
        %380 = vmatpush.msra.mxu0 0.0
        %381 = vmatpush.msra.mxu0 0.0
        %382 = vmatpush.msra.mxu0 0.0
        %383 = vmatpush.msra.mxu0 0.0
        %384 = vmatpush.msra.mxu0 0.0
        %385 = vmatpush.msra.mxu0 %v285
        %386 = vmatpush.msra.mxu0 %v284
        %387 = vmatpush.msra.mxu0 %v283
        %388 = vmatpush.msra.mxu0 %v282
        %389 = vmatmul.f32.gmra.mxu0 %v371
        %v390 = vpop.f32.mrf.mxu0
        %v391 = vadd.f32 0.0, %v390
        %392 = vdwg.mxu0
        %v394 = vrot.slane %v391, 5
        %v396 = vadd.f32 %v280, %v394
        %v397 = vtanh.pop %v396
        %v399 = vrot.slane %v397, 3
        %v400 = vsel %vm286, %v399, 0
        %402 = vmatpush.msra.mxu0 0.0
        %403 = vmatpush.msra.mxu0 0.0
        %404 = vmatpush.msra.mxu0 0.0
        %405 = vmatpush.msra.mxu0 0.0
        %406 = vmatpush.msra.mxu0 0.0
        %407 = vmatpush.msra.mxu0 0.0
        %408 = vmatpush.msra.mxu0 0.0
        %409 = vmatpush.msra.mxu0 0.0
        %410 = vmatpush.msra.mxu0 0.0
        %411 = vmatpush.msra.mxu0 0.0
        %412 = vmatpush.msra.mxu0 0.0
        %413 = vmatpush.msra.mxu0 0.0
        %414 = vmatpush.msra.mxu0 %v285
        %415 = vmatpush.msra.mxu0 %v284
        %416 = vmatpush.msra.mxu0 %v283
        %417 = vmatpush.msra.mxu0 %v282
        %418 = vmatmul.f32.gmra.mxu0 %v400
        %v419 = vpop.f32.mrf.mxu0
        %v420 = vadd.f32 0.0, %v419
        %421 = vdwg.mxu0
        %v423 = vrot.slane %v420, 4
        %v425 = vadd.f32 %v280, %v423
        %v426 = vtanh.pop %v425
        %v428 = vrot.slane %v426, 4
        %v429 = vsel %vm286, %v428, 0
        %431 = vmatpush.msra.mxu0 0.0
        %432 = vmatpush.msra.mxu0 0.0
        %433 = vmatpush.msra.mxu0 0.0
        %434 = vmatpush.msra.mxu0 0.0
        %435 = vmatpush.msra.mxu0 0.0
        %436 = vmatpush.msra.mxu0 0.0
        %437 = vmatpush.msra.mxu0 0.0
        %438 = vmatpush.msra.mxu0 0.0
        %439 = vmatpush.msra.mxu0 0.0
        %440 = vmatpush.msra.mxu0 0.0
        %441 = vmatpush.msra.mxu0 0.0
        %442 = vmatpush.msra.mxu0 0.0
        %443 = vmatpush.msra.mxu0 %v285
        %444 = vmatpush.msra.mxu0 %v284
        %445 = vmatpush.msra.mxu0 %v283
        %446 = vmatpush.msra.mxu0 %v282
        %447 = vmatmul.f32.gmra.mxu0 %v429
        %v448 = vpop.f32.mrf.mxu0
        %v449 = vadd.f32 0.0, %v448
        %450 = vdwg.mxu0
        %v452 = vrot.slane %v449, 3
        %v454 = vadd.f32 %v280, %v452
        %v455 = vtanh.pop %v454
        %v457 = vrot.slane %v455, 5
        %v458 = vsel %vm286, %v457, 0
        %460 = vmatpush.msra.mxu0 0.0
        %461 = vmatpush.msra.mxu0 0.0
        %462 = vmatpush.msra.mxu0 0.0
        %463 = vmatpush.msra.mxu0 0.0
        %464 = vmatpush.msra.mxu0 0.0
        %465 = vmatpush.msra.mxu0 0.0
        %466 = vmatpush.msra.mxu0 0.0
        %467 = vmatpush.msra.mxu0 0.0
        %468 = vmatpush.msra.mxu0 0.0
        %469 = vmatpush.msra.mxu0 0.0
        %470 = vmatpush.msra.mxu0 0.0
        %471 = vmatpush.msra.mxu0 0.0
        %472 = vmatpush.msra.mxu0 %v285
        %473 = vmatpush.msra.mxu0 %v284
        %474 = vmatpush.msra.mxu0 %v283
        %475 = vmatpush.msra.mxu0 %v282
        %476 = vmatmul.f32.gmra.mxu0 %v458
        %v477 = vpop.f32.mrf.mxu0
        %v478 = vadd.f32 0.0, %v477
        %479 = vdwg.mxu0
        %v481 = vrot.slane %v478, 2
        %v483 = vadd.f32 %v280, %v481
        %v484 = vtanh.pop %v483
        %v486 = vrot.slane %v484, 6
        %v487 = vsel %vm286, %v486, 0
        %489 = vmatpush.msra.mxu0 0.0
        %490 = vmatpush.msra.mxu0 0.0
        %491 = vmatpush.msra.mxu0 0.0
        %492 = vmatpush.msra.mxu0 0.0
        %493 = vmatpush.msra.mxu0 0.0
        %494 = vmatpush.msra.mxu0 0.0
        %495 = vmatpush.msra.mxu0 0.0
        %496 = vmatpush.msra.mxu0 0.0
        %497 = vmatpush.msra.mxu0 0.0
        %498 = vmatpush.msra.mxu0 0.0
        %499 = vmatpush.msra.mxu0 0.0
        %500 = vmatpush.msra.mxu0 0.0
        %501 = vmatpush.msra.mxu0 %v285
        %502 = vmatpush.msra.mxu0 %v284
        %503 = vmatpush.msra.mxu0 %v283
        %504 = vmatpush.msra.mxu0 %v282
        %505 = vmatmul.f32.gmra.mxu0 %v487
        %v506 = vpop.f32.mrf.mxu0
        %v507 = vadd.f32 0.0, %v506
        %508 = vdwg.mxu0
        %v510 = vrot.slane %v507, 1
        %v512 = vadd.f32 %v280, %v510
        %v513 = vtanh.pop %v512
        %v514 = vsel %vm238, %v311, %v339
        %v515 = vsel %vm240, %v514, %v368
        %v516 = vsel %vm242, %v515, %v397
        %v517 = vsel %vm244, %v516, %v426
        %v518 = vsel %vm246, %v517, %v455
        %v519 = vsel %vm248, %v518, %v484
        %v520 = vsel %vm250, %v519, %v513
        %v521 = vsel %vm286, %v520, -inf
        %522 = vmax.xlane.f32.xlu0 %v521
        %v523 = vpop.xlane.xlu0 %522
        %v524 = vsub.f32 %v520, %v523
        %v525 = vmul.f32 %v524, 1.442695
        %v526 = vpow.pop %v525
        %v527 = vsel %vm286, %v526, 0.0
        %528 = vadd.xlane.f32.xlu0 %v527
        %v529 = vpop.xlane.xlu0 %528
        %v530 = vrcp.pop %v529
        %v531 = vmul.f32 %v529, %v530
        %v532 = vsub.f32 1.0, %v531
        %v533 = vmul.f32 %v530, %v532
        %v534 = vadd.f32 %v530, %v533
        %vm535 = vweird.f32 %v529
        %vm536 = vweird.f32 %v530
        %vm537 = vmor %vm535, %vm536
        %v538 = vsel %vm537, %v530, %v534
        %v539 = vand.u32 2147483647, %v529
        %vm540 = vcmp.eq.f32.partialorder %v539, 8.507059e+37
        %v541 = vand.u32 %v529, 2147483648
        %v542 = vor.u32 1.1754944e-38, %v541
        %v543 = vsel %vm540, %v542, %v538
        %v544 = vmul.f32 %v526, %v543
        %545 = vst.msk [vmem:[%s184] sm:$0xff] %vm286, %v544
        %s546 = sand.u32 %s119, 1
        %s547 = scalar_lea.sflag [#allocation5], %s546
        %s548 = sand.u32 %s119, 1
        %s549 = smul.addr %s548, 8
        %s550 = scalar_lea.vmem [#allocation4], %s549
        // Predicated region
        $region37: #{tpu_custom_call.1} parent=35 // pred_check
          %p551 = pneg %p129
        $region38: #{tpu_custom_call.1} parent=35 // pred_check_branch
          %553 = sbr.rel (%p551) target = $region40
        $region39: #{tpu_custom_call.1} parent=35 // pred_region
          %555 = vsyncadd %s547, 0
          %s556 = smul.addr %s27, 8
          %s557 = scalar_lea.hbm %s5, %s556
          %s559 = sshll.u32 %s550, 4
          %s560 = int_to_ptr.vmem [resolvable:$true] %s559
          %s561 = sshll.u32 %s557, 4
          %s562 = int_to_ptr.hbm [resolvable:$true] %s561
          %564 = dma.vmem_to_hbm [thread:$0]  %s560, 128, %s562, %s547
        $region40: #{tpu_custom_call.1} parent=35 // pred_fallthru
          _
      $region36: #{tpu_custom_call.1} parent=5 // pred_fallthru
        _
      %p565 = scmp.le.s32.totalorder 2, %s22
      // Predicated region
      $region41: #{tpu_custom_call.1} parent=5 // pred_check
        %p566 = pneg %p565
      $region42: #{tpu_custom_call.1} parent=5 // pred_check_branch
        %568 = sbr.rel (%p566) target = $region44
      $region43: #{tpu_custom_call.1} parent=5 // pred_region
        %s569 = ssub.s32 %s22, 2
        // Predicated region
        $region45: #{tpu_custom_call.1} parent=43 // pred_check
          %p570 = pneg %p135
        $region46: #{tpu_custom_call.1} parent=43 // pred_check_branch
          %572 = sbr.rel (%p570) target = $region48
        $region47: #{tpu_custom_call.1} parent=43 // pred_region
          %s573 = sand.u32 %s120, 1
          %s574 = scalar_lea.sflag [#allocation5], %s573
          %s575 = sand.u32 %s120, 1
          %s576 = smul.addr %s575, 8
          %s577 = scalar_lea.vmem [#allocation4], %s576
          %579 = dma.done %s574, 128
        $region48: #{tpu_custom_call.1} parent=43 // pred_fallthru
          _
      $region44: #{tpu_custom_call.1} parent=5 // pred_fallthru
        _
    $region6: #{tpu_custom_call.1} parent=1 // loop_footer
      %s26 = sadd.s32 1, %s22
    $region7: #{tpu_custom_call.1} parent=1 // loop_footer_branch
      %21 = sbr.rel target = $region3
    $region8: #{tpu_custom_call.1} parent=1 // loop_exit
      _
    %580 = vsyncpa [#allocation5], 1
    %s581 = scalar_lea.sflag [#allocation5], 1
    %582 = vsyncpa %s581, 1

</llo_original>
